<compile_context>
chip_gen: v5e
topology: v5e:2x2
jax: 0.10.0
libtpu: 0.0.40
codegen_flags: <defaults>
</compile_context>

<pallas_src>
import jax
import jax.numpy as jnp
from jax.experimental import pallas as pl
from jax.experimental.pallas import tpu as pltpu

NUM_INPUT = 2
NUM_OUTPUT = 2

LANES = 128            # vreg / VMEM lane width
MIN_SPLIT_ROWS = 256   # below this (128 KiB/stream) one block is fine
MAX_TILE_ROWS = 2048   # 2048 x 128 x 4 B = 1 MiB per stream per buffer


def multi_io_kernel(coef_ref, x0_ref, x1_ref, o0_ref, o1_ref):
    """Elementwise fused forward.

    coef_ref : SMEM f32[8] (scalar prefetch) = [c00, c01, c10, c11, d0, d1, 0, 0]
               where o_j = x0*c_j0 + x1*c_j1 + d_j  (params pre-folded)
    x0_ref, x1_ref : VMEM f32[TR, 128]  lane-dense input tiles
    o0_ref, o1_ref : VMEM f32[TR, 128]  lane-dense output tiles
    """
    x0 = x0_ref[...]
    x1 = x1_ref[...]
    o0_ref[...] = x0 * coef_ref[0] + x1 * coef_ref[1] + coef_ref[4]
    o1_ref[...] = x0 * coef_ref[2] + x1 * coef_ref[3] + coef_ref[5]


def _tile_rows(rows):
    """Choose the sublane-row tile for a lane-dense [rows, 128] layout."""
    if rows <= MIN_SPLIT_ROWS:
        # Single block == full array extent.  NOTE: rows may not be a multiple
        # of 8 here; that is legal only because the block equals the full
        # array dims (the (8,128) rule) -- keep it that way.
        return rows
    # Aim for >= 4 blocks so the "parallel" axis shards across v7x's 2 TCs
    # and the pipeline has work to overlap; 8-sublane aligned; clamp to the
    # ~1 MiB/stream sweet spot.
    tr = pl.cdiv(rows, 4)
    tr = pl.cdiv(tr, 8) * 8
    return max(MIN_SPLIT_ROWS, min(tr, MAX_TILE_ROWS))


def multi_io_forward(params, x0, x1):
    """Forward pass matching MultiIOModel. x0, x1: f32[B, 1] -> two f32[B, 1]."""
    B = x0.shape[0]

    # ---- fold the 2-layer affine chain into per-output (c, d) coefficients --
    w_in, b_in = params["w_in"], params["b_in"]          # [2], [2]
    w_out, b_out = params["w_out"], params["b_out"]      # [2, 2], [2]
    c = (w_out * w_in[None, :]).astype(jnp.float32)      # [2, 2]
    d = (b_out + w_out @ b_in).astype(jnp.float32)       # [2]
    coef = jnp.concatenate(
        [c.reshape(-1), d, jnp.zeros((2,), jnp.float32)])  # f32[8] -> SMEM

    # ---- lane-dense layout: [B, 1] -> [rows, 128], no packing/stacking ------
    rem = B % LANES
    if rem == 0:
        rows = B // LANES
        x0_2d = x0.reshape(rows, LANES)       # contiguous reshape: no copy
        x1_2d = x1.reshape(rows, LANES)
    else:
        # Minimal pad to the next 128-lane boundary only (tile-boundary
        # raggedness is handled by Pallas partial-block masking below).
        pad = LANES - rem
        rows = (B + pad) // LANES
        x0_2d = jnp.pad(x0.reshape(B), (0, pad)).reshape(rows, LANES)
        x1_2d = jnp.pad(x1.reshape(B), (0, pad)).reshape(rows, LANES)

    tile_rows = _tile_rows(rows)
    grid = (pl.cdiv(rows, tile_rows),)
    # index_map receives the scalar-prefetch ref as a trailing positional arg.
    spec = pl.BlockSpec((tile_rows, LANES), lambda i, coef: (i, 0))

    o0_2d, o1_2d = pl.pallas_call(
        multi_io_kernel,
        out_shape=(jax.ShapeDtypeStruct((rows, LANES), jnp.float32),
                   jax.ShapeDtypeStruct((rows, LANES), jnp.float32)),
        grid_spec=pltpu.PrefetchScalarGridSpec(
            num_scalar_prefetch=1,
            grid=grid,
            in_specs=[spec, spec],
            out_specs=[spec, spec],
        ),
        compiler_params=pltpu.CompilerParams(
            dimension_semantics=("parallel",)),
    )(coef, x0_2d, x1_2d)

    # ---- unpack: strip lane padding, restore [B, 1] per output --------------
    o0 = o0_2d.reshape(rows * LANES)[:B][:, None]
    o1 = o1_2d.reshape(rows * LANES)[:B][:, None]
    return o0, o1


def init_params(key):
    """Deterministic synthetic parameters matching the module's shapes:
       inputs[i]:  Linear(1,1)  -> weight scalar, bias scalar   (i = 0,1)
       outputs[j]: Linear(2,1)  -> weight [1,2],  bias scalar   (j = 0,1)
    """
    k1, k2, k3, k4 = jax.random.split(key, 4)
    return {
        "w_in":  jax.random.normal(k1, (NUM_INPUT,), jnp.float32),
        "b_in":  jax.random.normal(k2, (NUM_INPUT,), jnp.float32),
        "w_out": jax.random.normal(k3, (NUM_OUTPUT, NUM_INPUT), jnp.float32),
        "b_out": jax.random.normal(k4, (NUM_OUTPUT,), jnp.float32),
    }


def reference_forward(params, x0, x1):
    """Pure-JAX reference mirroring the PyTorch forward pass."""
    h0 = x0 * params["w_in"][0] + params["b_in"][0]
    h1 = x1 * params["w_in"][1] + params["b_in"][1]
    cat = jnp.concatenate([h0, h1], axis=1)                        # [B, 2]
    return tuple(cat @ params["w_out"][j][:, None] + params["b_out"][j]
                 for j in range(NUM_OUTPUT))


if __name__ == "__main__":
    key = jax.random.PRNGKey(0)
    kp, kx = jax.random.split(key)
    params = init_params(kp)

    forward = jax.jit(multi_io_forward)

    # B=8   : ragged (pads to one 128-lane row)
    # B=256 : fast path (B % 128 == 0, pure reshape, rows not a multiple of 8)
    # B=300 : ragged, multi-row
    for B in (8, 256, 300):
        kx0, kx1, kx = jax.random.split(kx, 3)
        x0 = jax.random.normal(kx0, (B, 1), jnp.float32)
        x1 = jax.random.normal(kx1, (B, 1), jnp.float32)

        outs = jax.block_until_ready(forward(params, x0, x1))
        refs = reference_forward(params, x0, x1)
        for o, r in zip(outs, refs):
            assert o.shape == (B, 1)
            assert jnp.allclose(o, r, atol=1e-5, rtol=1e-5), (B, o, r)

    print("KERNEL_OK")
</pallas_src>

<mosaic_0001>
module attributes {stable_mosaic.version = 11 : i64} {
  func.func @multi_io_kernel(%arg0: i32, %arg1: memref<8xf32, #tpu.memory_space<smem>>, %arg2: memref<1x128xf32, #tpu.memory_space<vmem>>, %arg3: memref<1x128xf32, #tpu.memory_space<vmem>>, %arg4: memref<1x128xf32, #tpu.memory_space<vmem>>, %arg5: memref<1x128xf32, #tpu.memory_space<vmem>>) attributes {dimension_semantics = [#tpu.dimension_semantics<parallel>], iteration_bounds = array<i64: 1>, scalar_prefetch = 1 : i64, scratch_operands = 0 : i64, tpu.core_type = #tpu.core_type<tc>, window_params = [{transform_indices = @transform_0, window_bounds = array<i64: 1, 128>}, {transform_indices = @transform_1, window_bounds = array<i64: 1, 128>}, {transform_indices = @transform_2, window_bounds = array<i64: 1, 128>}, {transform_indices = @transform_3, window_bounds = array<i64: 1, 128>}]} {
    %c0 = arith.constant 0 : index
    %c0_0 = arith.constant 0 : index
    %0 = vector.load %arg2[%c0, %c0_0] : memref<1x128xf32, #tpu.memory_space<vmem>>, vector<1x128xf32>
    %c0_1 = arith.constant 0 : index
    %c0_2 = arith.constant 0 : index
    %1 = vector.load %arg3[%c0_1, %c0_2] : memref<1x128xf32, #tpu.memory_space<vmem>>, vector<1x128xf32>
    %c0_3 = arith.constant 0 : index
    %2 = memref.load %arg1[%c0_3] : memref<8xf32, #tpu.memory_space<smem>>
    %3 = vector.broadcast %2 : f32 to vector<1x128xf32>
    %4 = arith.mulf %0, %3 : vector<1x128xf32>
    %c1 = arith.constant 1 : index
    %5 = memref.load %arg1[%c1] : memref<8xf32, #tpu.memory_space<smem>>
    %6 = vector.broadcast %5 : f32 to vector<1x128xf32>
    %7 = arith.mulf %1, %6 : vector<1x128xf32>
    %8 = arith.addf %4, %7 : vector<1x128xf32>
    %c4 = arith.constant 4 : index
    %9 = memref.load %arg1[%c4] : memref<8xf32, #tpu.memory_space<smem>>
    %10 = vector.broadcast %9 : f32 to vector<1x128xf32>
    %11 = arith.addf %8, %10 : vector<1x128xf32>
    %c0_4 = arith.constant 0 : index
    %c0_5 = arith.constant 0 : index
    %12 = vector.load %arg4[%c0_4, %c0_5] : memref<1x128xf32, #tpu.memory_space<vmem>>, vector<1x128xf32>
    tpu.vector_store %arg4[%c0_4, %c0_5], %11 {strides = array<i32>} : memref<1x128xf32, #tpu.memory_space<vmem>>, vector<1x128xf32>,
    %c2 = arith.constant 2 : index
    %13 = memref.load %arg1[%c2] : memref<8xf32, #tpu.memory_space<smem>>
    %14 = vector.broadcast %13 : f32 to vector<1x128xf32>
    %15 = arith.mulf %0, %14 : vector<1x128xf32>
    %c3 = arith.constant 3 : index
    %16 = memref.load %arg1[%c3] : memref<8xf32, #tpu.memory_space<smem>>
    %17 = vector.broadcast %16 : f32 to vector<1x128xf32>
    %18 = arith.mulf %1, %17 : vector<1x128xf32>
    %19 = arith.addf %15, %18 : vector<1x128xf32>
    %c5 = arith.constant 5 : index
    %20 = memref.load %arg1[%c5] : memref<8xf32, #tpu.memory_space<smem>>
    %21 = vector.broadcast %20 : f32 to vector<1x128xf32>
    %22 = arith.addf %19, %21 : vector<1x128xf32>
    %c0_6 = arith.constant 0 : index
    %c0_7 = arith.constant 0 : index
    %23 = vector.load %arg5[%c0_6, %c0_7] : memref<1x128xf32, #tpu.memory_space<vmem>>, vector<1x128xf32>
    tpu.vector_store %arg5[%c0_6, %c0_7], %22 {strides = array<i32>} : memref<1x128xf32, #tpu.memory_space<vmem>>, vector<1x128xf32>,
    return
  }
  func.func @transform_0(%arg0: i32, %arg1: memref<8xf32, #tpu.memory_space<smem>>) -> (i32, i32) {
    %c0_i32 = arith.constant 0 : i32
    %c0_i32_0 = arith.constant 0 : i32
    return %arg0, %c0_i32 : i32, i32
  }
  func.func @transform_1(%arg0: i32, %arg1: memref<8xf32, #tpu.memory_space<smem>>) -> (i32, i32) {
    %c0_i32 = arith.constant 0 : i32
    %c0_i32_0 = arith.constant 0 : i32
    return %arg0, %c0_i32 : i32, i32
  }
  func.func @transform_2(%arg0: i32, %arg1: memref<8xf32, #tpu.memory_space<smem>>) -> (i32, i32) {
    %c0_i32 = arith.constant 0 : i32
    %c0_i32_0 = arith.constant 0 : i32
    return %arg0, %c0_i32 : i32, i32
  }
  func.func @transform_3(%arg0: i32, %arg1: memref<8xf32, #tpu.memory_space<smem>>) -> (i32, i32) {
    %c0_i32 = arith.constant 0 : i32
    %c0_i32_0 = arith.constant 0 : i32
    return %arg0, %c0_i32 : i32, i32
  }
}

</mosaic_0001>

<llo_original>
// kernel: multi_io_forward.1
$region0: #{multi_io_forward.1}
  #allocation0 [shape = 'u32[]', space=smem, size = 0x4, offset = 0x4, fixed_abs, tag = 'smem constant byte address 0x4 - core index']
  #allocation1 [shape = 'u32[72,128]{1,0:T(1,128)}', space=vmem, size = 0x9000, scoped, tag = 'internal scratch']
  #allocation2 [shape = 's32[1]{0}', space=sflag, size = 0x4, scoped, tag = 'scoped memory for multi_io_forward.1']
  #allocation3 [shape = 'u8[512]{0}', space=smem, size = 0x200, scoped, tag = 'prefetched SMEM operand 0']
  %s0 = inlined_call_operand.vmem [shape: f32[8], index: 0, kind: input, shape index: {}]
  %s1 = inlined_call_operand.vmem [shape: f32[1,128], index: 1, kind: input, shape index: {}]
  %s2 = inlined_call_operand.vmem [shape: f32[1,128], index: 2, kind: input, shape index: {}]
  %s3 = inlined_call_operand.vmem [shape: f32[1,128], index: 3, kind: output, shape index: {0}]
  %s4 = inlined_call_operand.vmem [shape: f32[1,128], index: 4, kind: output, shape index: {1}]
  %5 = xla_tuple %s3, %s4
  %s6 = sld [smem:[#allocation0]]
  $region26: #{multi_io_forward.1} parent=0
    _
  %s8 = ssub.s32 1, %s6
  %s9 = scalar_select 0, %s8, %s6
  %s11 = sshll.u32 %s0, 4
  %s12 = int_to_ptr.vmem [resolvable:$true] %s11
  %14 = dma.vmem_to_smem %s12, 16, [#allocation3], [#allocation2]
  %16 = dma.done [#allocation2], 16
  %17 = sfence
  // Predicated region
  $region2: #{multi_io_forward.1} parent=0 // pred_check
    _
  $region3: #{multi_io_forward.1} parent=0 // pred_check_branch
    %19 = sbr.rel (0) target = $region5
  $region4: #{multi_io_forward.1} parent=0 // pred_region
    _
  $region5: #{multi_io_forward.1} parent=0 // pred_fallthru
    _
  // Predicated region
  $region6: #{multi_io_forward.1} parent=0 // pred_check
    _
  $region7: #{multi_io_forward.1} parent=0 // pred_check_branch
    %21 = sbr.rel (0) target = $region9
  $region8: #{multi_io_forward.1} parent=0 // pred_region
    _
  $region9: #{multi_io_forward.1} parent=0 // pred_fallthru
    _
  %v22 = vld [vmem:[%s1] sm:$0x1]
  %v23 = vld [vmem:[%s2] sm:$0x1]
  %s24 = sld [smem:[#allocation3]]
  %v25 = vstv %s24
  %v26 = vmul.f32 %v22, %v25
  %s27 = sld [smem:[#allocation3 + $0x1]]
  %v28 = vstv %s27
  %v29 = vmul.f32 %v23, %v28
  %v30 = vadd.f32 %v26, %v29
  %s31 = sld [smem:[#allocation3 + $0x4]]
  %v32 = vstv %s31
  %v33 = vadd.f32 %v30, %v32
  %34 = vst [vmem:[%s3] sm:$0x1] %v33
  %s35 = sld [smem:[#allocation3 + $0x2]]
  %v36 = vstv %s35
  %v37 = vmul.f32 %v22, %v36
  %s38 = sld [smem:[#allocation3 + $0x3]]
  %v39 = vstv %s38
  %v40 = vmul.f32 %v23, %v39
  %v41 = vadd.f32 %v37, %v40
  %s42 = sld [smem:[#allocation3 + $0x5]]
  %v43 = vstv %s42
  %v44 = vadd.f32 %v41, %v43
  %45 = vst [vmem:[%s4] sm:$0x1] %v44
  // Predicated region
  $region10: #{multi_io_forward.1} parent=0 // pred_check
    _
  $region11: #{multi_io_forward.1} parent=0 // pred_check_branch
    %47 = sbr.rel (0) target = $region13
  $region12: #{multi_io_forward.1} parent=0 // pred_region
    _
  $region13: #{multi_io_forward.1} parent=0 // pred_fallthru
    _
  // Predicated region
  $region14: #{multi_io_forward.1} parent=0 // pred_check
    _
  $region15: #{multi_io_forward.1} parent=0 // pred_check_branch
    %49 = sbr.rel (0) target = $region17
  $region16: #{multi_io_forward.1} parent=0 // pred_region
    _
  $region17: #{multi_io_forward.1} parent=0 // pred_fallthru
    _
  // Predicated region
  $region18: #{multi_io_forward.1} parent=0 // pred_check
    _
  $region19: #{multi_io_forward.1} parent=0 // pred_check_branch
    %51 = sbr.rel (0) target = $region21
  $region20: #{multi_io_forward.1} parent=0 // pred_region
    _
  $region21: #{multi_io_forward.1} parent=0 // pred_fallthru
    _
  // Predicated region
  $region22: #{multi_io_forward.1} parent=0 // pred_check
    _
  $region23: #{multi_io_forward.1} parent=0 // pred_check_branch
    %53 = sbr.rel (0) target = $region25
  $region24: #{multi_io_forward.1} parent=0 // pred_region
    _
  $region25: #{multi_io_forward.1} parent=0 // pred_fallthru
    _

</llo_original>
